<compile_context>
chip_gen: v7x
topology: tpu7x:2x2x1
jax: 0.10.0
libtpu: 0.0.40
codegen_flags: <defaults>
</compile_context>

<pallas_src>
import functools

import jax
import jax.numpy as jnp
from jax.experimental import pallas as pl
from jax.experimental.pallas import tpu as pltpu

_LANE = 128
_SUBLANE = 8


def _sigmoid(t):
    # sigmoid(x) = 0.5 * (1 + tanh(x/2)): one EUP tanh instead of exp + divide.
    return 0.5 * (jnp.tanh(0.5 * t) + 1.0)


def _round_up(x, m):
    return ((x + m - 1) // m) * m


def _vmem_capacity_bytes():
    """Chip VMEM capacity (64 MiB on v7x, 128 MiB on v5e/v6e); safe fallback."""
    try:
        info = pltpu.get_tpu_info()
        cap = int(getattr(info, "vmem_capacity_bytes", 0) or 0)
        if cap > 0:
            return cap
    except Exception:
        pass
    return 64 * 1024 * 1024  # conservative (v7x-sized) fallback


def _footprint_bytes(tb, th, tk, *, in_b, w_b):
    """Double-buffered tile working set + f32 accumulator scratch (conservative)."""
    return (2 * (tb * tk * in_b            # xh tile
                 + tb * th * 4             # c tile (f32)
                 + tk * 4 * th * w_b       # fused gate-weight tile
                 + 4 * th * 4              # bias tile (f32)
                 + 2 * tb * th * 4)        # new_h / new_c tiles
            + tb * 4 * th * 4)             # f32 gate accumulator scratch


def _choose_hidden_tile(H, max_th=512):
    if H <= max_th:
        return H
    for cand in range(max_th, _LANE - 1, -_LANE):
        if H % cand == 0:
            return cand
    return H  # fallback: un-tiled hidden dim (rare: large H with no 128-multiple divisor)


def _choose_batch_tile(B, th, tk, budget, *, in_b, w_b, want_two_tiles=False):
    tb = B if B <= 256 else 256
    while tb > _SUBLANE and _footprint_bytes(tb, th, tk, in_b=in_b, w_b=w_b) > budget:
        tb = max(_SUBLANE, _round_up(tb // 2, _SUBLANE))
    if want_two_tiles and pl.cdiv(B, tb) < 2 and B >= 2 * _SUBLANE:
        # Split the batch so the grid has >=2 parallel tiles (keeps both v7x TCs busy;
        # on 1-TC chips the cost is a single extra ~0.35us grid step).
        tb = _round_up(pl.cdiv(B, 2), _SUBLANE)
    return tb


def pack_params(params, *, matmul_dtype=jnp.float32, batch_hint=256, vmem_budget=None):
    """One-time repack of LSTMCell parameters for the Pallas kernel.

    Call this ONCE, outside any recurrent/scan loop: the [K,4H] -> gate-fused,
    hidden-tiled weight relayout is a full HBM read+write of the weight tensor
    and must not be paid per timestep. The bf16 path pre-casts the weights here
    so the kernel DMAs half the bytes.
    """
    W_xh = jnp.asarray(params["W_xh"], jnp.float32)
    W_hh = jnp.asarray(params["W_hh"], jnp.float32)
    bias = jnp.asarray(params["bias"], jnp.float32)
    IN, H4 = W_xh.shape
    H = W_hh.shape[0]
    assert H4 == 4 * H and W_hh.shape == (H, 4 * H) and bias.shape == (4 * H,)
    K = IN + H

    cap = _vmem_capacity_bytes()
    if vmem_budget is None:
        # ~48 MiB on v7x (64 MiB VMEM), ~96 MiB on v5e/v6e (128 MiB VMEM).
        vmem_budget = int(cap * 0.75)

    mdt = jnp.dtype(matmul_dtype)
    in_b = w_b = mdt.itemsize

    th = _choose_hidden_tile(H)
    nh = H // th
    tb_hint = min(max(batch_hint, _SUBLANE), 256)

    # K tile: keep the whole contraction resident when it fits; otherwise add a
    # K-reduction grid axis in multiples of 128 (weights zero-padded along K).
    tk = K
    if K > _LANE and _footprint_bytes(tb_hint, th, tk, in_b=in_b, w_b=w_b) > vmem_budget:
        tk_cand = (K // _LANE) * _LANE
        while tk_cand > _LANE and _footprint_bytes(
                tb_hint, th, tk_cand, in_b=in_b, w_b=w_b) > vmem_budget:
            tk_cand -= _LANE
        tk = max(_LANE, tk_cand)
    K_pad = _round_up(K, tk)
    nk = K_pad // tk

    # Fused-gate, hidden-tiled layout: [nh, K_pad, 4*th]; last axis is the
    # (i|j|f|o) gate blocks (each width th) for hidden tile `hi`.
    w_full = jnp.concatenate([W_xh, W_hh], axis=0)            # [K, 4H]
    if K_pad > K:
        w_full = jnp.pad(w_full, ((0, K_pad - K), (0, 0)))    # zero rows -> exact sums
    w_packed = (w_full.reshape(K_pad, 4, nh, th)
                      .transpose(2, 0, 1, 3)
                      .reshape(nh, K_pad, 4 * th)
                      .astype(mdt))
    b_packed = (bias.reshape(4, nh, th)
                    .transpose(1, 0, 2)
                    .reshape(nh, 1, 4 * th)
                    .astype(jnp.float32))                     # bias stays f32

    return {
        "_lstm_packed": True,
        "w": w_packed, "b": b_packed,
        "input_size": IN, "hidden_size": H,
        "K": K, "K_pad": K_pad, "tk": tk, "nk": nk, "th": th, "nh": nh,
        "matmul_dtype": mdt,
        "vmem_budget": vmem_budget, "vmem_cap": cap,
    }


def _lstm_cell_kernel(xh_ref, c_ref, w_ref, b_ref, newh_ref, newc_ref,
                      acc_ref, *, forget_bias, th):
    # xh_ref : [tb, tk]        concat(x, h) tile (matmul dtype)
    # c_ref  : [tb, th]        cell-state tile
    # w_ref  : [1, tk, 4*th]   fused gate weights for this hidden tile
    # b_ref  : [1, 1, 4*th]    fused gate bias (f32)
    # acc_ref: [tb, 4*th]      f32 gate pre-activation accumulator (scratch)
    ki = pl.program_id(2)

    @pl.when(ki == 0)
    def _init():
        # Fold the bias into the accumulator init (no separate add).
        acc_ref[...] = jnp.broadcast_to(b_ref[0], acc_ref.shape)

    # One fused MXU contraction per grid step: [tb, tk] @ [tk, 4*th] -> f32 acc.
    acc_ref[...] += jnp.dot(xh_ref[...], w_ref[0],
                            preferred_element_type=jnp.float32)

    @pl.when(ki == pl.num_programs(2) - 1)
    def _finalize():
        acc = acc_ref[...]
        i_g = acc[:, 0 * th:1 * th]
        j_g = acc[:, 1 * th:2 * th]
        f_g = acc[:, 2 * th:3 * th]
        o_g = acc[:, 3 * th:4 * th]
        c = c_ref[...].astype(jnp.float32)
        new_c = c * _sigmoid(f_g + forget_bias) + _sigmoid(i_g) * jnp.tanh(j_g)
        new_h = jnp.tanh(new_c) * _sigmoid(o_g)
        newc_ref[...] = new_c.astype(newc_ref.dtype)
        newh_ref[...] = new_h.astype(newh_ref.dtype)


def lstm_cell(x, state, params, *, forget_bias=1.0, matmul_dtype=None):
    """Pallas LSTMCell forward.  x: [B, IN]; state = (c, h), each [B, H].

    `params` is either the raw parameter dict (repacked on the fly -- fine for a
    single call) or the result of pack_params() (pack ONCE outside a scan loop).
    Returns (new_h, (new_c, new_h)) like the PyTorch module; new_c keeps the
    dtype of the c input (keep the recurrent cell state in f32).
    """
    c, h = state
    if not (isinstance(params, dict) and params.get("_lstm_packed", False)):
        params = pack_params(params, matmul_dtype=(matmul_dtype or jnp.float32),
                             batch_hint=x.shape[0])
    p = params
    B, IN = x.shape
    H = p["hidden_size"]
    assert IN == p["input_size"] and h.shape == (B, H) and c.shape == (B, H)

    K, K_pad, tk, nk = p["K"], p["K_pad"], p["tk"], p["nk"]
    th, nh = p["th"], p["nh"]
    mdt = p["matmul_dtype"]
    in_b = mdt.itemsize

    # Fused K contraction input (exactly what the module builds). Zero-pad only
    # when K is tiled so boundary K tiles contribute exact zeros, never garbage.
    # TODO(synk): optionally pass x / h as two inputs (two accumulated dots) to
    #             drop this per-step [B, K] concat copy for very large B.
    xh = jnp.concatenate([x, h], axis=1).astype(mdt)
    if K_pad > K:
        xh = jnp.pad(xh, ((0, 0), (0, K_pad - K)))

    tb = _choose_batch_tile(B, th, tk, p["vmem_budget"], in_b=in_b, w_b=in_b,
                            want_two_tiles=(nh == 1))
    nb = pl.cdiv(B, tb)

    # Grid: hidden outermost (weights streamed from HBM once), batch fast
    # parallel axis, K-reduction innermost ("arbitrary").
    grid = (nh, nb, nk)

    kernel = functools.partial(_lstm_cell_kernel,
                               forget_bias=float(forget_bias), th=th)

    cost = pl.CostEstimate(
        flops=2 * B * K_pad * 4 * H + 12 * B * H,
        transcendentals=5 * B * H,
        bytes_accessed=(xh.size * in_b + p["w"].size * in_b + p["b"].size * 4
                        + c.size * jnp.dtype(c.dtype).itemsize
                        + B * H * (jnp.dtype(h.dtype).itemsize
                                   + jnp.dtype(c.dtype).itemsize)),
    )

    cap = p["vmem_cap"]
    vmem_limit = max(32 * 1024 * 1024, min(int(cap * 0.85), cap - (8 << 20)))

    new_h, new_c = pl.pallas_call(
        kernel,
        out_shape=(jax.ShapeDtypeStruct((B, H), h.dtype),    # new_h
                   jax.ShapeDtypeStruct((B, H), c.dtype)),   # new_c (f32 state preserved)
        grid=grid,
        in_specs=[
            pl.BlockSpec((tb, tk), lambda hi, bi, ki: (bi, ki)),              # xh
            pl.BlockSpec((tb, th), lambda hi, bi, ki: (bi, hi)),              # c
            pl.BlockSpec((1, tk, 4 * th), lambda hi, bi, ki: (hi, ki, 0)),    # fused weights
            pl.BlockSpec((1, 1, 4 * th), lambda hi, bi, ki: (hi, 0, 0)),      # fused bias
        ],
        out_specs=(pl.BlockSpec((tb, th), lambda hi, bi, ki: (bi, hi)),
                   pl.BlockSpec((tb, th), lambda hi, bi, ki: (bi, hi))),
        scratch_shapes=[pltpu.VMEM((tb, 4 * th), jnp.float32)],
        compiler_params=pltpu.CompilerParams(
            dimension_semantics=("parallel", "parallel", "arbitrary"),
            vmem_limit_bytes=vmem_limit),
        cost_estimate=cost,
    )(xh, c, p["w"], p["b"])

    return new_h, (new_c, new_h)


def init_params(key, input_size, hidden_size):
    """Mirrors the PyTorch __init__: orthogonal W_xh/W_hh, zero bias."""
    k1, k2 = jax.random.split(key)
    ortho = jax.nn.initializers.orthogonal()
    return {
        "W_xh": ortho(k1, (input_size, 4 * hidden_size), jnp.float32),
        "W_hh": ortho(k2, (hidden_size, 4 * hidden_size), jnp.float32),
        "bias": jnp.zeros((4 * hidden_size,), jnp.float32),
    }


def lstm_cell_ref(x, c, h, params, forget_bias=1.0):
    """Pure-JAX reference, literal transcription of the PyTorch forward."""
    concat = jnp.concatenate([x, h], axis=1)
    w_full = jnp.concatenate([params["W_xh"], params["W_hh"]], axis=0)
    gates = concat @ w_full + params["bias"]
    i, j, f, o = jnp.split(gates, 4, axis=1)
    j = jnp.tanh(j)
    new_c = c * jax.nn.sigmoid(f + forget_bias) + jax.nn.sigmoid(i) * j
    new_h = jnp.tanh(new_c) * jax.nn.sigmoid(o)
    return new_h, new_c


if __name__ == "__main__":
    # Small shapes consistent with the module's forward:
    #   x: [batch, input_size], state: (c, h) each [batch, hidden_size]
    B, IN, H = 8, 16, 32

    key = jax.random.PRNGKey(0)
    kx, kc, kh, kp = jax.random.split(key, 4)
    x = jax.random.normal(kx, (B, IN), jnp.float32)
    c = jax.random.normal(kc, (B, H), jnp.float32)
    h = jax.random.normal(kh, (B, H), jnp.float32)
    params = init_params(kp, IN, H)

    ref_h, ref_c = lstm_cell_ref(x, c, h, params)

    # f32 MXU path: weights packed once (as a recurrent loop would do).
    packed_f32 = pack_params(params, matmul_dtype=jnp.float32, batch_hint=B)
    new_h, (new_c, new_h_again) = lstm_cell(x, (c, h), packed_f32)
    new_h, new_c = jax.block_until_ready((new_h, new_c))
    assert new_h.shape == (B, H) and new_c.shape == (B, H)
    assert jnp.allclose(new_h, ref_h, atol=1e-5, rtol=1e-5), "new_h mismatch (f32)"
    assert jnp.allclose(new_c, ref_c, atol=1e-5, rtol=1e-5), "new_c mismatch (f32)"
    assert jnp.allclose(new_h_again, new_h), "state tuple mismatch"

    # bf16-fed MXU path: weights pre-cast once in pack_params, f32 accumulation,
    # cell state stays f32. Looser tolerance.
    packed_bf16 = pack_params(params, matmul_dtype=jnp.bfloat16, batch_hint=B)
    bh, (bc, _) = lstm_cell(x, (c, h), packed_bf16)
    bh, bc = jax.block_until_ready((bh, bc))
    assert bc.dtype == c.dtype, "cell state dtype must be preserved"
    assert jnp.allclose(bh, ref_h, atol=5e-2, rtol=5e-2), "new_h mismatch (bf16)"
    assert jnp.allclose(bc, ref_c, atol=5e-2, rtol=5e-2), "new_c mismatch (bf16)"

    print("KERNEL_OK")
</pallas_src>

<mosaic_0001>
module attributes {stable_mosaic.version = 11 : i64} {
  func.func @_lstm_cell_kernel(%arg0: i32, %arg1: i32, %arg2: i32, %arg3: memref<8x48xf32, #tpu.memory_space<vmem>>, %arg4: memref<8x32xf32, #tpu.memory_space<vmem>>, %arg5: memref<1x48x128xf32, #tpu.memory_space<vmem>>, %arg6: memref<1x1x128xf32, #tpu.memory_space<vmem>>, %arg7: memref<8x32xf32, #tpu.memory_space<vmem>>, %arg8: memref<8x32xf32, #tpu.memory_space<vmem>>, %arg9: memref<8x128xf32, #tpu.memory_space<vmem>>) attributes {dimension_semantics = [#tpu.dimension_semantics<parallel>, #tpu.dimension_semantics<parallel>, #tpu.dimension_semantics<arbitrary>], iteration_bounds = array<i64: 1, 1, 1>, scalar_prefetch = 0 : i64, scratch_operands = 1 : i64, tpu.core_type = #tpu.core_type<tc>, window_params = [{transform_indices = @transform_0, window_bounds = array<i64: 8, 48>}, {transform_indices = @transform_1, window_bounds = array<i64: 8, 32>}, {transform_indices = @transform_2, window_bounds = array<i64: 1, 48, 128>}, {transform_indices = @transform_3, window_bounds = array<i64: 1, 1, 128>}, {transform_indices = @transform_4, window_bounds = array<i64: 8, 32>}, {transform_indices = @transform_5, window_bounds = array<i64: 8, 32>}]} {
    %c0_i32 = arith.constant 0 : i32
    %0 = arith.cmpi eq, %arg2, %c0_i32 : i32
    %1 = arith.extui %0 : i1 to i32
    %c0_i32_0 = arith.constant 0 : i32
    %2 = arith.cmpi ne, %1, %c0_i32_0 : i32
    scf.if %2 {
      %c0_11 = arith.constant 0 : index
      %c0_12 = arith.constant 0 : index
      %c0_13 = arith.constant 0 : index
      %13 = vector.load %arg6[%c0_11, %c0_12, %c0_13] : memref<1x1x128xf32, #tpu.memory_space<vmem>>, vector<1x1x128xf32>
      %14 = vector.shape_cast %13 : vector<1x1x128xf32> to vector<1x128xf32>
      %15 = vector.shape_cast %14 : vector<1x128xf32> to vector<1x128xf32>
      %16 = vector.broadcast %15 : vector<1x128xf32> to vector<8x128xf32>
      %c0_14 = arith.constant 0 : index
      %c0_15 = arith.constant 0 : index
      %17 = vector.load %arg9[%c0_14, %c0_15] : memref<8x128xf32, #tpu.memory_space<vmem>>, vector<8x128xf32>
      tpu.vector_store %arg9[%c0_14, %c0_15], %16 {strides = array<i32>} : memref<8x128xf32, #tpu.memory_space<vmem>>, vector<8x128xf32>,
    } else {
    }
    %c0 = arith.constant 0 : index
    %c0_1 = arith.constant 0 : index
    %3 = vector.load %arg9[%c0, %c0_1] : memref<8x128xf32, #tpu.memory_space<vmem>>, vector<8x128xf32>
    %c0_2 = arith.constant 0 : index
    %c0_3 = arith.constant 0 : index
    %4 = vector.load %arg3[%c0_2, %c0_3] : memref<8x48xf32, #tpu.memory_space<vmem>>, vector<8x48xf32>
    %c0_4 = arith.constant 0 : index
    %c0_5 = arith.constant 0 : index
    %c0_6 = arith.constant 0 : index
    %5 = vector.load %arg5[%c0_4, %c0_5, %c0_6] : memref<1x48x128xf32, #tpu.memory_space<vmem>>, vector<1x48x128xf32>
    %6 = vector.shape_cast %5 : vector<1x48x128xf32> to vector<48x128xf32>
    %cst = arith.constant dense<0.000000e+00> : vector<8x128xf32>
    %7 = tpu.matmul %4, %6, %cst {dimension_numbers = #tpu.dot_dimension_numbers<[1], [0], [0], [1], [0, 0, 1, 1], [], []>} : vector<8x48xf32>, vector<48x128xf32>, vector<8x128xf32> -> vector<8x128xf32>
    %8 = arith.addf %3, %7 : vector<8x128xf32>
    %c0_7 = arith.constant 0 : index
    %c0_8 = arith.constant 0 : index
    %9 = vector.load %arg9[%c0_7, %c0_8] : memref<8x128xf32, #tpu.memory_space<vmem>>, vector<8x128xf32>
    tpu.vector_store %arg9[%c0_7, %c0_8], %8 {strides = array<i32>} : memref<8x128xf32, #tpu.memory_space<vmem>>, vector<8x128xf32>,
    %c0_i32_9 = arith.constant 0 : i32
    %10 = arith.cmpi eq, %arg2, %c0_i32_9 : i32
    %11 = arith.extui %10 : i1 to i32
    %c0_i32_10 = arith.constant 0 : i32
    %12 = arith.cmpi ne, %11, %c0_i32_10 : i32
    scf.if %12 {
      %c0_11 = arith.constant 0 : index
      %c0_12 = arith.constant 0 : index
      %13 = vector.load %arg9[%c0_11, %c0_12] : memref<8x128xf32, #tpu.memory_space<vmem>>, vector<8x128xf32>
      %14 = vector.extract_strided_slice %13 {offsets = [0, 0], sizes = [8, 32], strides = [1, 1]} : vector<8x128xf32> to vector<8x32xf32>
      %15 = vector.extract_strided_slice %13 {offsets = [0, 32], sizes = [8, 32], strides = [1, 1]} : vector<8x128xf32> to vector<8x32xf32>
      %16 = vector.extract_strided_slice %13 {offsets = [0, 64], sizes = [8, 32], strides = [1, 1]} : vector<8x128xf32> to vector<8x32xf32>
      %17 = vector.extract_strided_slice %13 {offsets = [0, 96], sizes = [8, 32], strides = [1, 1]} : vector<8x128xf32> to vector<8x32xf32>
      %c0_13 = arith.constant 0 : index
      %c0_14 = arith.constant 0 : index
      %18 = vector.load %arg4[%c0_13, %c0_14] : memref<8x32xf32, #tpu.memory_space<vmem>>, vector<8x32xf32>
      %cst_15 = arith.constant 1.000000e+00 : f32
      %19 = vector.broadcast %cst_15 : f32 to vector<8x32xf32>
      %20 = arith.addf %16, %19 : vector<8x32xf32>
      %cst_16 = arith.constant 5.000000e-01 : f32
      %21 = vector.broadcast %cst_16 : f32 to vector<8x32xf32>
      %22 = arith.mulf %21, %20 : vector<8x32xf32>
      %23 = math.tanh %22 : vector<8x32xf32>
      %cst_17 = arith.constant 1.000000e+00 : f32
      %24 = vector.broadcast %cst_17 : f32 to vector<8x32xf32>
      %25 = arith.addf %23, %24 : vector<8x32xf32>
      %cst_18 = arith.constant 5.000000e-01 : f32
      %26 = vector.broadcast %cst_18 : f32 to vector<8x32xf32>
      %27 = arith.mulf %26, %25 : vector<8x32xf32>
      %28 = arith.mulf %18, %27 : vector<8x32xf32>
      %cst_19 = arith.constant 5.000000e-01 : f32
      %29 = vector.broadcast %cst_19 : f32 to vector<8x32xf32>
      %30 = arith.mulf %29, %14 : vector<8x32xf32>
      %31 = math.tanh %30 : vector<8x32xf32>
      %cst_20 = arith.constant 1.000000e+00 : f32
      %32 = vector.broadcast %cst_20 : f32 to vector<8x32xf32>
      %33 = arith.addf %31, %32 : vector<8x32xf32>
      %cst_21 = arith.constant 5.000000e-01 : f32
      %34 = vector.broadcast %cst_21 : f32 to vector<8x32xf32>
      %35 = arith.mulf %34, %33 : vector<8x32xf32>
      %36 = math.tanh %15 : vector<8x32xf32>
      %37 = arith.mulf %35, %36 : vector<8x32xf32>
      %38 = arith.addf %28, %37 : vector<8x32xf32>
      %39 = math.tanh %38 : vector<8x32xf32>
      %cst_22 = arith.constant 5.000000e-01 : f32
      %40 = vector.broadcast %cst_22 : f32 to vector<8x32xf32>
      %41 = arith.mulf %40, %17 : vector<8x32xf32>
      %42 = math.tanh %41 : vector<8x32xf32>
      %cst_23 = arith.constant 1.000000e+00 : f32
      %43 = vector.broadcast %cst_23 : f32 to vector<8x32xf32>
      %44 = arith.addf %42, %43 : vector<8x32xf32>
      %cst_24 = arith.constant 5.000000e-01 : f32
      %45 = vector.broadcast %cst_24 : f32 to vector<8x32xf32>
      %46 = arith.mulf %45, %44 : vector<8x32xf32>
      %47 = arith.mulf %39, %46 : vector<8x32xf32>
      %c0_25 = arith.constant 0 : index
      %c0_26 = arith.constant 0 : index
      %48 = vector.load %arg8[%c0_25, %c0_26] : memref<8x32xf32, #tpu.memory_space<vmem>>, vector<8x32xf32>
      tpu.vector_store %arg8[%c0_25, %c0_26], %38 {strides = array<i32>} : memref<8x32xf32, #tpu.memory_space<vmem>>, vector<8x32xf32>,
      %c0_27 = arith.constant 0 : index
      %c0_28 = arith.constant 0 : index
      %49 = vector.load %arg7[%c0_27, %c0_28] : memref<8x32xf32, #tpu.memory_space<vmem>>, vector<8x32xf32>
      tpu.vector_store %arg7[%c0_27, %c0_28], %47 {strides = array<i32>} : memref<8x32xf32, #tpu.memory_space<vmem>>, vector<8x32xf32>,
    } else {
    }
    return
  }
  func.func @transform_0(%arg0: i32, %arg1: i32, %arg2: i32) -> (i32, i32) {
    %c0_i32 = arith.constant 0 : i32
    return %arg1, %arg2 : i32, i32
  }
  func.func @transform_1(%arg0: i32, %arg1: i32, %arg2: i32) -> (i32, i32) {
    %c0_i32 = arith.constant 0 : i32
    return %arg1, %arg0 : i32, i32
  }
  func.func @transform_2(%arg0: i32, %arg1: i32, %arg2: i32) -> (i32, i32, i32) {
    %c0_i32 = arith.constant 0 : i32
    %c0_i32_0 = arith.constant 0 : i32
    return %arg0, %arg2, %c0_i32 : i32, i32, i32
  }
  func.func @transform_3(%arg0: i32, %arg1: i32, %arg2: i32) -> (i32, i32, i32) {
    %c0_i32 = arith.constant 0 : i32
    %c0_i32_0 = arith.constant 0 : i32
    %c0_i32_1 = arith.constant 0 : i32
    return %arg0, %c0_i32, %c0_i32_0 : i32, i32, i32
  }
  func.func @transform_4(%arg0: i32, %arg1: i32, %arg2: i32) -> (i32, i32) {
    %c0_i32 = arith.constant 0 : i32
    return %arg1, %arg0 : i32, i32
  }
  func.func @transform_5(%arg0: i32, %arg1: i32, %arg2: i32) -> (i32, i32) {
    %c0_i32 = arith.constant 0 : i32
    return %arg1, %arg0 : i32, i32
  }
}

</mosaic_0001>

<llo_original>
// kernel: tpu_custom_call.1
$region0: #{tpu_custom_call.1}
  #allocation0 [shape = 'u32[]', space=smem, size = 0x4, offset = 0x4, fixed_abs, tag = 'smem constant byte address 0x4 - core index']
  #allocation1 [shape = 'u32[144,128]{1,0:T(1,128)}', space=vmem, size = 0x12000, scoped, tag = 'internal scratch']
  #allocation2 [shape = 'f32[8,128]{1,0:T(8,128)}', space=vmem, size = 0x1000, scoped, tag = 'scratch operand']
  %s0 = inlined_call_operand.hbm [shape: f32[8,48], index: 0, kind: input, shape index: {}]
  %s1 = inlined_call_operand.hbm [shape: f32[8,32], index: 1, kind: input, shape index: {}]
  %s2 = inlined_call_operand.hbm [shape: f32[1,48,128], index: 2, kind: input, shape index: {}]
  %s3 = inlined_call_operand.vmem [shape: f32[1,1,128], index: 3, kind: input, shape index: {}]
  %s4 = inlined_call_operand.hbm [shape: f32[8,32], index: 4, kind: output, shape index: {0}]
  %s5 = inlined_call_operand.hbm [shape: f32[8,32], index: 5, kind: output, shape index: {1}]
  %6 = xla_tuple %s4, %s5
  %s7 = sld [smem:[#allocation0]]
  $region54: #{tpu_custom_call.1} parent=0
    _
  %s9 = ssub.s32 1, %s7
  %s10 = scalar_select 0, %s9, %s7
  $region1: #{tpu_custom_call.1} parent=0
    #allocation3 [shape = 'u8[4096]{0}', space=vmem, size = 0x1000, scoped, tag = 'input window, operand 0, single buffered']
    #allocation4 [shape = 's32[1]{0}', space=sflag, size = 0x4, scoped, tag = 'scoped memory for tpu_custom_call.1']
    #allocation5 [shape = 's32[1]{0}', space=sflag, size = 0x4, scoped, tag = 'scoped memory for tpu_custom_call.1']
    #allocation6 [shape = 'u8[4096]{0}', space=vmem, size = 0x1000, scoped, tag = 'input window, operand 1, single buffered']
    #allocation7 [shape = 's32[1]{0}', space=sflag, size = 0x4, scoped, tag = 'scoped memory for tpu_custom_call.1']
    #allocation8 [shape = 'u8[24576]{0}', space=vmem, size = 0x6000, scoped, tag = 'input window, operand 2, single buffered']
    #allocation9 [shape = 'u8[4096]{0}', space=vmem, size = 0x1000, scoped, tag = 'output window, operand 0, single buffered']
    #allocation10 [shape = 'u8[4096]{0}', space=vmem, size = 0x1000, scoped, tag = 'output window, operand 1, single buffered']
    #allocation11 [shape = 's32[1]{0}', space=sflag, size = 0x4, scoped, tag = 'scoped memory for tpu_custom_call.1']
    %11 = vsyncpa [#allocation4], 0
    %12 = vsyncpa [#allocation7], 0
    %13 = vsyncpa [#allocation5], 0
    %14 = vsyncpa [#allocation11], 0
    // Predicated region
    $region2: #{tpu_custom_call.1} parent=1 // pred_check
      _
    $region3: #{tpu_custom_call.1} parent=1 // pred_check_branch
      %16 = sbr.rel (0) target = $region5
    $region4: #{tpu_custom_call.1} parent=1 // pred_region
      %s18 = ssub.s32 128, 128
      %19 = vsyncadd [#allocation4], %s18
      %s21 = sshll.u32 [#allocation3], 4
      %s22 = int_to_ptr.vmem [resolvable:$true] %s21
      %24 = dma.hbm_to_vmem [thread:$0]  %s0, 128, %s22, [#allocation4]
    $region5: #{tpu_custom_call.1} parent=1 // pred_fallthru
      _
    // Predicated region
    $region6: #{tpu_custom_call.1} parent=1 // pred_check
      _
    $region7: #{tpu_custom_call.1} parent=1 // pred_check_branch
      %26 = sbr.rel (0) target = $region9
    $region8: #{tpu_custom_call.1} parent=1 // pred_region
      %s28 = ssub.s32 128, 128
      %29 = vsyncadd [#allocation7], %s28
      %s31 = sshll.u32 [#allocation6], 4
      %s32 = int_to_ptr.vmem [resolvable:$true] %s31
      %34 = dma.hbm_to_vmem [thread:$0]  %s1, 128, %s32, [#allocation7]
    $region9: #{tpu_custom_call.1} parent=1 // pred_fallthru
      _
    // Predicated region
    $region10: #{tpu_custom_call.1} parent=1 // pred_check
      _
    $region11: #{tpu_custom_call.1} parent=1 // pred_check_branch
      %36 = sbr.rel (0) target = $region13
    $region12: #{tpu_custom_call.1} parent=1 // pred_region
      %s38 = ssub.s32 768, 768
      %39 = vsyncadd [#allocation7], %s38
      %s40 = sshll.u32 [#allocation8], 4
      %s41 = int_to_ptr.vmem [resolvable:$true] %s40
      %46 = dma.hbm_to_vmem [thread:$0]  %s2, 768, %s41, [#allocation7], 128, 128, 8
    $region13: #{tpu_custom_call.1} parent=1 // pred_fallthru
      _
    // Predicated region
    $region14: #{tpu_custom_call.1} parent=1 // pred_check
      _
    $region15: #{tpu_custom_call.1} parent=1 // pred_check_branch
      %48 = sbr.rel (0) target = $region17
    $region16: #{tpu_custom_call.1} parent=1 // pred_region
      _
    $region17: #{tpu_custom_call.1} parent=1 // pred_fallthru
      _
    // Predicated region
    $region18: #{tpu_custom_call.1} parent=1 // pred_check
      _
    $region19: #{tpu_custom_call.1} parent=1 // pred_check_branch
      %50 = sbr.rel (0) target = $region21
    $region20: #{tpu_custom_call.1} parent=1 // pred_region
      %51 = dma.done [#allocation4], 128
    $region21: #{tpu_custom_call.1} parent=1 // pred_fallthru
      _
    // Predicated region
    $region22: #{tpu_custom_call.1} parent=1 // pred_check
      _
    $region23: #{tpu_custom_call.1} parent=1 // pred_check_branch
      %53 = sbr.rel (0) target = $region25
    $region24: #{tpu_custom_call.1} parent=1 // pred_region
      %54 = dma.done [#allocation7], 128
    $region25: #{tpu_custom_call.1} parent=1 // pred_fallthru
      _
    // Predicated region
    $region26: #{tpu_custom_call.1} parent=1 // pred_check
      _
    $region27: #{tpu_custom_call.1} parent=1 // pred_check_branch
      %56 = sbr.rel (0) target = $region29
    $region28: #{tpu_custom_call.1} parent=1 // pred_region
      %57 = dma.done [#allocation7], 768
    $region29: #{tpu_custom_call.1} parent=1 // pred_fallthru
      _
    %p58 = scmp.eq.s32.totalorder 0, 0
    // Predicated region
    $region30: #{tpu_custom_call.1} parent=1 // pred_check
      %p59 = pneg %p58
    $region31: #{tpu_custom_call.1} parent=1 // pred_check_branch
      %61 = sbr.rel (%p59) target = $region33
    $region32: #{tpu_custom_call.1} parent=1 // pred_region
      %v62 = vld [vmem:[%s3] sm:$0x1]
      %v64 = vlaneseq
      %v65 = vshrl.u32 %v64, 7
      %v66 = vsub.s32 0, %v65
      %v67 = vrot.slane %v62, %v66
      %69 = vst [vmem:[#allocation2] sm:$0xff] %v67
    $region33: #{tpu_custom_call.1} parent=1 // pred_fallthru
      _
    %v70 = vld [vmem:[#allocation2] sm:$0xff]
    %v71 = vld [vmem:[#allocation3] sm:$0xff]
    %v72 = vld [vmem:[#allocation8] sm:$0xff]
    %v73 = vld [vmem:[#allocation8 + $0x8] sm:$0xff]
    %v74 = vld [vmem:[#allocation8 + $0x10] sm:$0xff]
    %v75 = vld [vmem:[#allocation8 + $0x18] sm:$0xff]
    %v76 = vld [vmem:[#allocation8 + $0x20] sm:$0xff]
    %v77 = vld [vmem:[#allocation8 + $0x28] sm:$0xff]
    %vm78 = vcmask 392192
    %v80 = vsel %vm78, %v71, 0
    %82 = vmatprep.subr.mxu0 0.0
    %83 = vmatpush1.msra.mxu0 %v72
    %84 = vmatprep.subr.mxu0 0.0
    %85 = vmatpush1.msra.mxu0 %v73
    %86 = vmatprep.subr.mxu0 0.0
    %87 = vmatpush1.msra.mxu0 %v74
    %88 = vmatprep.subr.mxu0 0.0
    %89 = vmatpush1.msra.mxu0 %v75
    %90 = vmatprep.subr.mxu0 0.0
    %91 = vmatpush1.msra.mxu0 %v76
    %92 = vmatprep.subr.mxu0 0.0
    %93 = vmatpush1.msra.mxu0 %v77
    %94 = vmatprep.subr.mxu0 0.0
    %95 = vmatpush1.msra.mxu0 0.0
    %96 = vmatprep.subr.mxu0 0.0
    %97 = vmatpush1.msra.mxu0 0.0
    %98 = vmatprep.subr.mxu0 0.0
    %99 = vmatpush1.msra.mxu0 0.0
    %100 = vmatprep.subr.mxu0 0.0
    %101 = vmatpush1.msra.mxu0 0.0
    %102 = vmatprep.subr.mxu0 0.0
    %103 = vmatpush1.msra.mxu0 0.0
    %104 = vmatprep.subr.mxu0 0.0
    %105 = vmatpush1.msra.mxu0 0.0
    %106 = vmatprep.subr.mxu0 0.0
    %107 = vmatpush1.msra.mxu0 0.0
    %108 = vmatprep.subr.mxu0 0.0
    %109 = vmatpush1.msra.mxu0 0.0
    %110 = vmatprep.subr.mxu0 0.0
    %111 = vmatpush1.msra.mxu0 0.0
    %112 = vmatprep.subr.mxu0 0.0
    %113 = vmatpush1.msra.mxu0 0.0
    %114 = vmatprep.subr.mxu0 0.0
    %115 = vmatpush1.msra.mxu0 0.0
    %116 = vmatprep.subr.mxu0 0.0
    %117 = vmatpush1.msra.mxu0 0.0
    %118 = vmatprep.subr.mxu0 0.0
    %119 = vmatpush1.msra.mxu0 0.0
    %120 = vmatprep.subr.mxu0 0.0
    %121 = vmatpush1.msra.mxu0 0.0
    %122 = vmatprep.subr.mxu0 0.0
    %123 = vmatpush1.msra.mxu0 0.0
    %124 = vmatprep.subr.mxu0 0.0
    %125 = vmatpush1.msra.mxu0 0.0
    %126 = vmatprep.subr.mxu0 0.0
    %127 = vmatpush1.msra.mxu0 0.0
    %128 = vmatprep.subr.mxu0 0.0
    %129 = vmatpush1.msra.mxu0 0.0
    %130 = vmatprep.subr.mxu0 0.0
    %131 = vmatpush1.msra.mxu0 0.0
    %132 = vmatprep.subr.mxu0 0.0
    %133 = vmatpush1.msra.mxu0 0.0
    %134 = vmatprep.subr.mxu0 0.0
    %135 = vmatpush1.msra.mxu0 0.0
    %136 = vmatprep.subr.mxu0 0.0
    %137 = vmatpush1.msra.mxu0 0.0
    %138 = vmatprep.subr.mxu0 0.0
    %139 = vmatpush1.msra.mxu0 0.0
    %140 = vmatprep.subr.mxu0 0.0
    %141 = vmatpush1.msra.mxu0 0.0
    %142 = vmatprep.subr.mxu0 0.0
    %143 = vmatpush1.msra.mxu0 0.0
    %144 = vmatprep.subr.mxu0 0.0
    %145 = vmatpush1.msra.mxu0 0.0
    %146 = vmatprep.mubr.f32.mxu0 0.0
    %147 = vmatmul.mubr.f32.gmra.mrb[0].mxu0 %v80
    %v148 = vpop.f32.mrb[0].mxu0
    %v149 = vadd.f32 0.0, %v148
    %v150 = vpop.f32.mrb[0].mxu0
    %151 = vdwg.mxu0
    %v152 = vadd.f32 %v70, %v149
    %153 = vst [vmem:[#allocation2] sm:$0xff] %v152
    // Predicated region
    $region34: #{tpu_custom_call.1} parent=1 // pred_check
      %p154 = pneg %p58
    $region35: #{tpu_custom_call.1} parent=1 // pred_check_branch
      %156 = sbr.rel (%p154) target = $region37
    $region36: #{tpu_custom_call.1} parent=1 // pred_region
      %v157 = vld [vmem:[#allocation2] sm:$0xff]
      %v158 = vld [vmem:[#allocation6] sm:$0xff]
      %v159 = vadd.f32 %v157, 1.0
      %v160 = vmul.f32 %v159, 0.5
      %v161 = vtanh.pop %v160
      %v162 = vadd.f32 %v161, 1.0
      %v163 = vmul.f32 %v162, 0.5
      %165 = vrot.lane.b32.xlu0 %v163, 64
      %v166 = vpop.permute.xlu0 %165
      %v168 = vmul.f32 %v158, %v166
      %v169 = vmul.f32 %v157, 0.5
      %v170 = vtanh.pop %v169
      %v171 = vadd.f32 %v170, 1.0
      %v172 = vmul.f32 %v171, 0.5
      %v173 = vtanh.pop %v157
      %175 = vrot.lane.b32.xlu0 %v173, 96
      %v176 = vpop.permute.xlu0 %175
      %v178 = vmul.f32 %v172, %v176
      %v179 = vadd.f32 %v168, %v178
      %v180 = vtanh.pop %v179
      %182 = vrot.lane.b32.xlu0 %v172, 32
      %v183 = vpop.permute.xlu0 %182
      %v185 = vmul.f32 %v180, %v183
      %vm186 = vcmask 261120
      %187 = vst.msk [vmem:[#allocation10] sm:$0xff] %vm186, %v179
      %188 = vst.msk [vmem:[#allocation9] sm:$0xff] %vm186, %v185
    $region37: #{tpu_custom_call.1} parent=1 // pred_fallthru
      _
    // Predicated region
    $region38: #{tpu_custom_call.1} parent=1 // pred_check
      _
    $region39: #{tpu_custom_call.1} parent=1 // pred_check_branch
      %190 = sbr.rel (0) target = $region41
    $region40: #{tpu_custom_call.1} parent=1 // pred_region
      %s192 = ssub.s32 128, 128
      %193 = vsyncadd [#allocation5], %s192
      %s195 = sshll.u32 [#allocation9], 4
      %s196 = int_to_ptr.vmem [resolvable:$true] %s195
      %198 = dma.vmem_to_hbm [thread:$0]  %s196, 128, %s4, [#allocation5]
    $region41: #{tpu_custom_call.1} parent=1 // pred_fallthru
      _
    // Predicated region
    $region42: #{tpu_custom_call.1} parent=1 // pred_check
      _
    $region43: #{tpu_custom_call.1} parent=1 // pred_check_branch
      %200 = sbr.rel (0) target = $region45
    $region44: #{tpu_custom_call.1} parent=1 // pred_region
      %s202 = ssub.s32 128, 128
      %203 = vsyncadd [#allocation11], %s202
      %s205 = sshll.u32 [#allocation10], 4
      %s206 = int_to_ptr.vmem [resolvable:$true] %s205
      %208 = dma.vmem_to_hbm [thread:$0]  %s206, 128, %s5, [#allocation11]
    $region45: #{tpu_custom_call.1} parent=1 // pred_fallthru
      _
    // Predicated region
    $region46: #{tpu_custom_call.1} parent=1 // pred_check
      _
    $region47: #{tpu_custom_call.1} parent=1 // pred_check_branch
      %210 = sbr.rel (0) target = $region49
    $region48: #{tpu_custom_call.1} parent=1 // pred_region
      %211 = dma.done [#allocation5], 128
    $region49: #{tpu_custom_call.1} parent=1 // pred_fallthru
      _
    // Predicated region
    $region50: #{tpu_custom_call.1} parent=1 // pred_check
      _
    $region51: #{tpu_custom_call.1} parent=1 // pred_check_branch
      %213 = sbr.rel (0) target = $region53
    $region52: #{tpu_custom_call.1} parent=1 // pred_region
      %214 = dma.done [#allocation11], 128
    $region53: #{tpu_custom_call.1} parent=1 // pred_fallthru
      _
    %215 = vsyncpa [#allocation4], 1
    %216 = vsyncpa [#allocation7], 1
    %217 = vsyncpa [#allocation5], 1
    %218 = vsyncpa [#allocation11], 1

</llo_original>
